<compile_context>
chip_gen: v7x
topology: tpu7x:2x2x1
jax: 0.10.0
libtpu: 0.0.40
codegen_flags: <defaults>
</compile_context>

<pallas_src>
import functools

import jax
import jax.numpy as jnp
from jax.experimental import pallas as pl
from jax.experimental.pallas import tpu as pltpu


def _round_up(x, m):
    return ((x + m - 1) // m) * m


def _default_gate_dtype():
    # bf16 sigmoid/tanh roughly halve EUP cost on v6e/v7x; v5e's EUP/VPU have
    # no bf16 path, so keep f32 there.
    try:
        kind = jax.devices()[0].device_kind.lower()
    except Exception:
        return jnp.float32
    return jnp.float32 if "v5" in kind else jnp.bfloat16


def _lstm_op_kernel(left_ref, right_ref, w_ref, b_ref, out_ref, *,
                    hidden_size, gate_dtype):
    H = hidden_size

    l_c = left_ref[:, H:]
    r_c = right_ref[:, H:]

    # Linear transform on the MXU. Instead of materializing
    # h = concat(l_h, r_h) (an extra [bb, 2H] VMEM temp + copies), split the
    # K=2H contraction into two accumulating K=H matmuls on static,
    # lane-aligned slices. bf16 operands, f32 accumulator.
    w = w_ref[...]
    z = jnp.dot(left_ref[:, :H].astype(w.dtype), w[:H, :],
                preferred_element_type=jnp.float32)
    z = z + jnp.dot(right_ref[:, :H].astype(w.dtype), w[H:, :],
                    preferred_element_type=jnp.float32)
    z = z + b_ref[...]

    # Transcendentals: gate_dtype=bf16 relieves the EUP bottleneck on v6e/v7x.
    za = z.astype(gate_dtype)
    gates = jax.nn.sigmoid(za[:, : 4 * H])
    i = gates[:, 0 * H:1 * H].astype(jnp.float32)
    f1 = gates[:, 1 * H:2 * H].astype(jnp.float32)
    f2 = gates[:, 2 * H:3 * H].astype(jnp.float32)
    o = gates[:, 3 * H:4 * H].astype(jnp.float32)
    in_c = jnp.tanh(za[:, 4 * H:]).astype(jnp.float32)

    # Cell / hidden updates stay in f32.
    c = i * in_c + f1 * l_c + f2 * r_c
    h_new = o * jnp.tanh(c.astype(gate_dtype)).astype(jnp.float32)

    # Store the two halves directly (lane-dense unmasked vst), no concat temp.
    out_ref[:, :H] = h_new.astype(out_ref.dtype)
    out_ref[:, H:] = c.astype(out_ref.dtype)


def lstm_op(left, right, w, b, *, block_b=None, gate_dtype=None):
    """Pallas implementation of LSTMOp.forward.

    left, right: [B, nhid] float32
    w: [nhid, 5*(nhid//2)]  (transposed PyTorch Linear weight)
    b: [5*(nhid//2)]
    returns: [B, nhid]
    """
    B, nhid = left.shape
    assert nhid % 2 == 0
    H = nhid // 2
    assert H % 128 == 0, "hidden_size must be lane-aligned (multiple of 128)"
    assert right.shape == (B, nhid)
    assert w.shape == (nhid, 5 * H)
    assert b.shape == (5 * H,)

    if gate_dtype is None:
        gate_dtype = _default_gate_dtype()

    # ---- batch tiling ------------------------------------------------------
    if block_b is None:
        desired = 256  # >=128 fills v5e's MXU rows; 256 matches v6e/v7x MXU
        half = _round_up(pl.cdiv(B, 2), 8)  # keep grid >= 2 when possible
        block_b = max(8, min(desired, half))
    assert block_b % 8 == 0

    Bp = _round_up(B, block_b)
    if Bp != B:
        pad = ((0, Bp - B), (0, 0))
        left_p = jnp.pad(left, pad)
        right_p = jnp.pad(right, pad)
    else:
        left_p, right_p = left, right

    w_bf16 = w.astype(jnp.bfloat16)          # native MXU dtype on v5e/v6e/v7x
    b2d = b.astype(jnp.float32).reshape(1, 5 * H)

    grid = (Bp // block_b,)

    # ---- VMEM budget -------------------------------------------------------
    tile_bytes = block_b * nhid * 4                  # one f32 activation tile
    w_bytes = nhid * 5 * H * 2                       # bf16 weight block
    b_bytes = 5 * H * 4
    needed = 2 * 3 * tile_bytes + 2 * w_bytes + 2 * b_bytes
    # Leave headroom vs v7x's 64 MiB physical VMEM; well within v5e/v6e 128 MiB.
    vmem_limit = int(min(max(32 * 1024 * 1024, 4 * needed), 48 * 1024 * 1024))

    cost = pl.CostEstimate(
        flops=2 * Bp * nhid * 5 * H,
        transcendentals=6 * Bp * H,                  # 4H sigmoid + 2H tanh / row
        bytes_accessed=3 * Bp * nhid * 4 + w_bytes + b_bytes,
    )

    kernel = functools.partial(_lstm_op_kernel, hidden_size=H,
                               gate_dtype=gate_dtype)

    out = pl.pallas_call(
        kernel,
        out_shape=jax.ShapeDtypeStruct((Bp, nhid), left.dtype),
        grid_spec=pltpu.PrefetchScalarGridSpec(
            num_scalar_prefetch=0,
            grid=grid,
            in_specs=[
                pl.BlockSpec((block_b, nhid), lambda i: (i, 0)),   # left tile
                pl.BlockSpec((block_b, nhid), lambda i: (i, 0)),   # right tile
                pl.BlockSpec((nhid, 5 * H), lambda i: (0, 0)),     # weights
                pl.BlockSpec((1, 5 * H), lambda i: (0, 0)),        # bias
            ],
            out_specs=pl.BlockSpec((block_b, nhid), lambda i: (i, 0)),
        ),
        compiler_params=pltpu.CompilerParams(
            dimension_semantics=("parallel",),
            vmem_limit_bytes=vmem_limit,
        ),
        cost_estimate=cost,
    )(left_p, right_p, w_bf16, b2d)

    return out[:B] if Bp != B else out


def lstm_op_ref(left, right, w, b):
    """Pure-JAX f32 reference mirroring the PyTorch forward."""
    H = left.shape[-1] // 2
    l_h, l_c = left[:, :H], left[:, H:]
    r_h, r_c = right[:, :H], right[:, H:]
    h = jnp.concatenate([l_h, r_h], axis=-1)
    z = h @ w + b
    gates = jax.nn.sigmoid(z[:, : 4 * H])
    i, f1, f2, o = jnp.split(gates, 4, axis=-1)
    in_c = jnp.tanh(z[:, 4 * H:])
    c = i * in_c + f1 * l_c + f2 * r_c
    h_new = o * jnp.tanh(c)
    return jnp.concatenate([h_new, c], axis=-1)


if __name__ == "__main__":
    # Small shapes: nhid=256 -> hidden_size=128 (lane-aligned).
    # B=24 is deliberately NOT a multiple of the auto batch tile -> exercises
    # the padding path and a grid of length 2.
    B = 24
    NHID = 256
    H = NHID // 2

    key = jax.random.PRNGKey(0)
    k_left, k_right, k_w, k_b = jax.random.split(key, 4)

    left = jax.random.normal(k_left, (B, NHID), dtype=jnp.float32)
    right = jax.random.normal(k_right, (B, NHID), dtype=jnp.float32)

    # Deterministic Linear params (PyTorch-style uniform(-1/sqrt(in), 1/sqrt(in))).
    bound = 1.0 / (NHID ** 0.5)
    w = jax.random.uniform(k_w, (NHID, 5 * H), dtype=jnp.float32,
                           minval=-bound, maxval=bound)
    b = jax.random.uniform(k_b, (5 * H,), dtype=jnp.float32,
                           minval=-bound, maxval=bound)

    ref = lstm_op_ref(left, right, w, b)

    # Default path: bf16 MXU operands, gate dtype auto-picked per generation.
    out = jax.block_until_ready(lstm_op(left, right, w, b))
    assert out.shape == (B, NHID)
    assert jnp.allclose(out, ref, atol=6e-2, rtol=6e-2), "mismatch (auto gates)"

    # Stricter check with the f32 gate path (only matmul operands are bf16).
    out_f32 = jax.block_until_ready(
        lstm_op(left, right, w, b, gate_dtype=jnp.float32))
    assert jnp.allclose(out_f32, ref, atol=2e-2, rtol=2e-2), "mismatch (f32 gates)"

    # Note: self.dropout is defined in __init__ but never applied in forward,
    # so no dropout is implemented here.
    print("KERNEL_OK")
</pallas_src>

<mosaic_0001>
module attributes {stable_mosaic.version = 11 : i64} {
  func.func @_lstm_op_kernel(%arg0: i32, %arg1: memref<16x256xf32, #tpu.memory_space<vmem>>, %arg2: memref<16x256xf32, #tpu.memory_space<vmem>>, %arg3: memref<256x640xbf16, #tpu.memory_space<vmem>>, %arg4: memref<1x640xf32, #tpu.memory_space<vmem>>, %arg5: memref<16x256xf32, #tpu.memory_space<vmem>>) attributes {dimension_semantics = [#tpu.dimension_semantics<parallel>], iteration_bounds = array<i64: 2>, scalar_prefetch = 0 : i64, scratch_operands = 0 : i64, tpu.core_type = #tpu.core_type<tc>, window_params = [{transform_indices = @transform_0, window_bounds = array<i64: 16, 256>}, {transform_indices = @transform_1, window_bounds = array<i64: 16, 256>}, {pipeline_mode = #tpu.pipeline_mode<synchronous>, transform_indices = @transform_2, window_bounds = array<i64: 256, 640>}, {pipeline_mode = #tpu.pipeline_mode<synchronous>, transform_indices = @transform_3, window_bounds = array<i64: 1, 640>}, {transform_indices = @transform_4, window_bounds = array<i64: 16, 256>}]} {
    %c0 = arith.constant 0 : index
    %c128 = arith.constant 128 : index
    %0 = vector.load %arg1[%c0, %c128] : memref<16x256xf32, #tpu.memory_space<vmem>>, vector<16x128xf32>
    %c0_0 = arith.constant 0 : index
    %c128_1 = arith.constant 128 : index
    %1 = vector.load %arg2[%c0_0, %c128_1] : memref<16x256xf32, #tpu.memory_space<vmem>>, vector<16x128xf32>
    %c0_2 = arith.constant 0 : index
    %c0_3 = arith.constant 0 : index
    %2 = vector.load %arg3[%c0_2, %c0_3] : memref<256x640xbf16, #tpu.memory_space<vmem>>, vector<256x640xbf16>
    %c0_4 = arith.constant 0 : index
    %c0_5 = arith.constant 0 : index
    %3 = vector.load %arg1[%c0_4, %c0_5] : memref<16x256xf32, #tpu.memory_space<vmem>>, vector<16x128xf32>
    %4 = arith.truncf %3 : vector<16x128xf32> to vector<16x128xbf16>
    %5 = vector.extract_strided_slice %2 {offsets = [0, 0], sizes = [128, 640], strides = [1, 1]} : vector<256x640xbf16> to vector<128x640xbf16>
    %cst = arith.constant dense<0.000000e+00> : vector<16x640xf32>
    %6 = tpu.matmul %4, %5, %cst {dimension_numbers = #tpu.dot_dimension_numbers<[1], [0], [0], [1], [0, 0, 1, 1], [], []>} : vector<16x128xbf16>, vector<128x640xbf16>, vector<16x640xf32> -> vector<16x640xf32>
    %c0_6 = arith.constant 0 : index
    %c0_7 = arith.constant 0 : index
    %7 = vector.load %arg2[%c0_6, %c0_7] : memref<16x256xf32, #tpu.memory_space<vmem>>, vector<16x128xf32>
    %8 = arith.truncf %7 : vector<16x128xf32> to vector<16x128xbf16>
    %9 = vector.extract_strided_slice %2 {offsets = [128, 0], sizes = [128, 640], strides = [1, 1]} : vector<256x640xbf16> to vector<128x640xbf16>
    %cst_8 = arith.constant dense<0.000000e+00> : vector<16x640xf32>
    %10 = tpu.matmul %8, %9, %cst_8 {dimension_numbers = #tpu.dot_dimension_numbers<[1], [0], [0], [1], [0, 0, 1, 1], [], []>} : vector<16x128xbf16>, vector<128x640xbf16>, vector<16x640xf32> -> vector<16x640xf32>
    %11 = arith.addf %6, %10 : vector<16x640xf32>
    %c0_9 = arith.constant 0 : index
    %c0_10 = arith.constant 0 : index
    %12 = vector.load %arg4[%c0_9, %c0_10] : memref<1x640xf32, #tpu.memory_space<vmem>>, vector<1x640xf32>
    %13 = vector.broadcast %12 : vector<1x640xf32> to vector<16x640xf32>
    %14 = arith.addf %11, %13 : vector<16x640xf32>
    %15 = arith.truncf %14 : vector<16x640xf32> to vector<16x640xbf16>
    %16 = vector.extract_strided_slice %15 {offsets = [0, 0], sizes = [16, 512], strides = [1, 1]} : vector<16x640xbf16> to vector<16x512xbf16>
    %17 = arith.negf %16 : vector<16x512xbf16>
    %18 = math.exp %17 : vector<16x512xbf16>
    %cst_11 = arith.constant 1.000000e+00 : bf16
    %19 = vector.broadcast %cst_11 : bf16 to vector<16x512xbf16>
    %20 = arith.addf %19, %18 : vector<16x512xbf16>
    %21 = arith.divf %19, %20 : vector<16x512xbf16>
    %22 = vector.extract_strided_slice %21 {offsets = [0, 0], sizes = [16, 128], strides = [1, 1]} : vector<16x512xbf16> to vector<16x128xbf16>
    %23 = arith.extf %22 : vector<16x128xbf16> to vector<16x128xf32>
    %24 = vector.extract_strided_slice %21 {offsets = [0, 128], sizes = [16, 128], strides = [1, 1]} : vector<16x512xbf16> to vector<16x128xbf16>
    %25 = arith.extf %24 : vector<16x128xbf16> to vector<16x128xf32>
    %26 = vector.extract_strided_slice %21 {offsets = [0, 256], sizes = [16, 128], strides = [1, 1]} : vector<16x512xbf16> to vector<16x128xbf16>
    %27 = arith.extf %26 : vector<16x128xbf16> to vector<16x128xf32>
    %28 = vector.extract_strided_slice %21 {offsets = [0, 384], sizes = [16, 128], strides = [1, 1]} : vector<16x512xbf16> to vector<16x128xbf16>
    %29 = arith.extf %28 : vector<16x128xbf16> to vector<16x128xf32>
    %30 = vector.extract_strided_slice %15 {offsets = [0, 512], sizes = [16, 128], strides = [1, 1]} : vector<16x640xbf16> to vector<16x128xbf16>
    %31 = math.tanh %30 : vector<16x128xbf16>
    %32 = arith.extf %31 : vector<16x128xbf16> to vector<16x128xf32>
    %33 = arith.mulf %23, %32 : vector<16x128xf32>
    %34 = arith.mulf %25, %0 : vector<16x128xf32>
    %35 = arith.addf %33, %34 : vector<16x128xf32>
    %36 = arith.mulf %27, %1 : vector<16x128xf32>
    %37 = arith.addf %35, %36 : vector<16x128xf32>
    %38 = arith.truncf %37 : vector<16x128xf32> to vector<16x128xbf16>
    %39 = math.tanh %38 : vector<16x128xbf16>
    %40 = arith.extf %39 : vector<16x128xbf16> to vector<16x128xf32>
    %41 = arith.mulf %29, %40 : vector<16x128xf32>
    %c0_12 = arith.constant 0 : index
    %c0_13 = arith.constant 0 : index
    %42 = vector.load %arg5[%c0_12, %c0_13] : memref<16x256xf32, #tpu.memory_space<vmem>>, vector<16x128xf32>
    tpu.vector_store %arg5[%c0_12, %c0_13], %41 {strides = array<i32>} : memref<16x256xf32, #tpu.memory_space<vmem>>, vector<16x128xf32>,
    %c0_14 = arith.constant 0 : index
    %c128_15 = arith.constant 128 : index
    %43 = vector.load %arg5[%c0_14, %c128_15] : memref<16x256xf32, #tpu.memory_space<vmem>>, vector<16x128xf32>
    tpu.vector_store %arg5[%c0_14, %c128_15], %37 {strides = array<i32>} : memref<16x256xf32, #tpu.memory_space<vmem>>, vector<16x128xf32>,
    return
  }
  func.func @transform_0(%arg0: i32) -> (i32, i32) {
    %c0_i32 = arith.constant 0 : i32
    %c0_i32_0 = arith.constant 0 : i32
    return %arg0, %c0_i32 : i32, i32
  }
  func.func @transform_1(%arg0: i32) -> (i32, i32) {
    %c0_i32 = arith.constant 0 : i32
    %c0_i32_0 = arith.constant 0 : i32
    return %arg0, %c0_i32 : i32, i32
  }
  func.func @transform_2(%arg0: i32) -> (i32, i32) {
    %c0_i32 = arith.constant 0 : i32
    %c0_i32_0 = arith.constant 0 : i32
    %c0_i32_1 = arith.constant 0 : i32
    return %c0_i32, %c0_i32_0 : i32, i32
  }
  func.func @transform_3(%arg0: i32) -> (i32, i32) {
    %c0_i32 = arith.constant 0 : i32
    %c0_i32_0 = arith.constant 0 : i32
    %c0_i32_1 = arith.constant 0 : i32
    return %c0_i32, %c0_i32_0 : i32, i32
  }
  func.func @transform_4(%arg0: i32) -> (i32, i32) {
    %c0_i32 = arith.constant 0 : i32
    %c0_i32_0 = arith.constant 0 : i32
    return %arg0, %c0_i32 : i32, i32
  }
}

</mosaic_0001>

<llo_original>
// kernel: tpu_custom_call.1
$region0: #{tpu_custom_call.1}
  #allocation0 [shape = 'u32[]', space=smem, size = 0x4, offset = 0x4, fixed_abs, tag = 'smem constant byte address 0x4 - core index']
  #allocation1 [shape = 'u32[144,128]{1,0:T(1,128)}', space=vmem, size = 0x12000, scoped, tag = 'internal scratch']
  %s0 = inlined_call_operand.hbm [shape: f32[32,256], index: 0, kind: input, shape index: {}]
  %s1 = inlined_call_operand.hbm [shape: f32[32,256], index: 1, kind: input, shape index: {}]
  %s2 = inlined_call_operand.hbm [shape: bf16[256,640], index: 2, kind: input, shape index: {}]
  %s3 = inlined_call_operand.vmem [shape: f32[1,640], index: 3, kind: input, shape index: {}]
  %s4 = inlined_call_operand.hbm [shape: f32[32,256], index: 4, kind: output, shape index: {}]
  %s5 = sld [smem:[#allocation0]]
  $region61: #{tpu_custom_call.1} parent=0
    _
  %s7 = ssub.s32 1, %s5
  %s8 = scalar_select 0, %s7, %s5
  $region1: #{tpu_custom_call.1} parent=0
    #allocation2 [shape = 'u8[32768]{0}', space=vmem, size = 0x8000, scoped, tag = 'input window, operand 0']
    #allocation3 [shape = 's32[2]{0}', space=sflag, size = 0x8, scoped, tag = 'scoped memory for tpu_custom_call.1']
    #allocation4 [shape = 's32[2]{0}', space=sflag, size = 0x8, scoped, tag = 'scoped memory for tpu_custom_call.1']
    #allocation5 [shape = 'u8[32768]{0}', space=vmem, size = 0x8000, scoped, tag = 'input window, operand 1']
    #allocation6 [shape = 's32[2]{0}', space=sflag, size = 0x8, scoped, tag = 'scoped memory for tpu_custom_call.1']
    #allocation7 [shape = 'u8[327680]{0}', space=vmem, size = 0x50000, scoped, tag = 'input window, operand 2, single buffered']
    #allocation8 [shape = 'u8[32768]{0}', space=vmem, size = 0x8000, scoped, tag = 'output window, operand 0']
    %9 = vsyncpa [#allocation3], 0
    %s10 = scalar_lea.sflag [#allocation3], 1
    %11 = vsyncpa %s10, 0
    %12 = vsyncpa [#allocation6], 0
    %s13 = scalar_lea.sflag [#allocation6], 1
    %14 = vsyncpa %s13, 0
    %15 = vsyncpa [#allocation4], 0
    %s16 = scalar_lea.sflag [#allocation4], 1
    %17 = vsyncpa %s16, 0
    loop: start=0, step=1, limit=4
    $region2: #{tpu_custom_call.1} parent=1 // loop_pre_header
      _
    $region3: #{tpu_custom_call.1} parent=1 // loop_header
      %s19 = sphi 0, %s23
      %p20 = scmp.ge.s32.totalorder %s19, 4
      %s29 = sphi 0, %s31
      %s32 = sphi 0, %s29
      %s33 = sphi 0, %s32
      %s49 = sphi 0, %s33
      %s55 = sphi 0, %s57
      %s58 = sphi 0, %s55
      %s59 = sphi 0, %s58
      %s75 = sphi 0, %s59
      %s79 = sphi 0, %s79
      %s81 = sphi 0, %s79
      %s82 = sphi 0, %s81
      %s96 = sphi 0, %s82
      %s100 = sphi 0, %s100
      %s102 = sphi 0, %s100
      %s103 = sphi 0, %s102
      %s117 = sphi 0, %s103
      %s123 = sphi 0, %s125
      %s126 = sphi 0, %s123
      %s127 = sphi 0, %s126
      %s143 = sphi 0, %s127
    $region4: #{tpu_custom_call.1} parent=1 // loop_header_branch
      %22 = sbr.rel (%p20) target = $region8
    $region5: #{tpu_custom_call.1} parent=1 // loop_body
      %s24 = ssub.s32 %s19, 1
      %s25 = ssub.s32 %s19, 2
      %s26 = sadd.s32 %s19, 1
      %s27 = ssub.s32 %s19, %s26
      %p28 = scmp.eq.s32.totalorder %s27, 0
      %s30 = sadd.s32 %s29, 1
      %s31 = scalar_select %p28, %s29, %s30
      %p34 = pneg %p28
      %p35 = scmp.eq.s32.totalorder %s19, 1
      %p36 = por %p34, %p35
      %p37 = scmp.ne.s32.totalorder %s29, %s32
      %p38 = scmp.eq.s32.totalorder %s19, 0
      %p39 = por %p37, %p38
      %p40 = scmp.ne.s32.totalorder %s29, %s32
      %p41 = scmp.eq.s32.totalorder %s24, 1
      %p42 = por %p40, %p41
      %p43 = scmp.ne.s32.totalorder %s32, %s33
      %p44 = scmp.eq.s32.totalorder %s24, 0
      %p45 = por %p43, %p44
      %p46 = scmp.ne.s32.totalorder %s32, %s33
      %p47 = scmp.eq.s32.totalorder %s25, 1
      %p48 = por %p46, %p47
      %p50 = scmp.ne.s32.totalorder %s33, %s49
      %p51 = scmp.eq.s32.totalorder %s25, 0
      %p52 = por %p50, %p51
      %s53 = ssub.s32 %s19, %s26
      %p54 = scmp.eq.s32.totalorder %s53, 0
      %s56 = sadd.s32 %s55, 1
      %s57 = scalar_select %p54, %s55, %s56
      %p60 = pneg %p54
      %p61 = scmp.eq.s32.totalorder %s19, 1
      %p62 = por %p60, %p61
      %p63 = scmp.ne.s32.totalorder %s55, %s58
      %p64 = scmp.eq.s32.totalorder %s19, 0
      %p65 = por %p63, %p64
      %p66 = scmp.ne.s32.totalorder %s55, %s58
      %p67 = scmp.eq.s32.totalorder %s24, 1
      %p68 = por %p66, %p67
      %p69 = scmp.ne.s32.totalorder %s58, %s59
      %p70 = scmp.eq.s32.totalorder %s24, 0
      %p71 = por %p69, %p70
      %p72 = scmp.ne.s32.totalorder %s58, %s59
      %p73 = scmp.eq.s32.totalorder %s25, 1
      %p74 = por %p72, %p73
      %p76 = scmp.ne.s32.totalorder %s59, %s75
      %p77 = scmp.eq.s32.totalorder %s25, 0
      %p78 = por %p76, %p77
      %s80 = sadd.s32 %s79, 1
      %p83 = scmp.eq.s32.totalorder %s19, 1
      %p84 = scmp.ne.s32.totalorder %s79, %s81
      %p85 = scmp.eq.s32.totalorder %s19, 0
      %p86 = por %p84, %p85
      %p87 = scmp.ne.s32.totalorder %s79, %s81
      %p88 = scmp.eq.s32.totalorder %s24, 1
      %p89 = por %p87, %p88
      %p90 = scmp.ne.s32.totalorder %s81, %s82
      %p91 = scmp.eq.s32.totalorder %s24, 0
      %p92 = por %p90, %p91
      %p93 = scmp.ne.s32.totalorder %s81, %s82
      %p94 = scmp.eq.s32.totalorder %s25, 1
      %p95 = por %p93, %p94
      %p97 = scmp.ne.s32.totalorder %s82, %s96
      %p98 = scmp.eq.s32.totalorder %s25, 0
      %p99 = por %p97, %p98
      %s101 = sadd.s32 %s100, 1
      %p104 = scmp.eq.s32.totalorder %s19, 1
      %p105 = scmp.ne.s32.totalorder %s100, %s102
      %p106 = scmp.eq.s32.totalorder %s19, 0
      %p107 = por %p105, %p106
      %p108 = scmp.ne.s32.totalorder %s100, %s102
      %p109 = scmp.eq.s32.totalorder %s24, 1
      %p110 = por %p108, %p109
      %p111 = scmp.ne.s32.totalorder %s102, %s103
      %p112 = scmp.eq.s32.totalorder %s24, 0
      %p113 = por %p111, %p112
      %p114 = scmp.ne.s32.totalorder %s102, %s103
      %p115 = scmp.eq.s32.totalorder %s25, 1
      %p116 = por %p114, %p115
      %p118 = scmp.ne.s32.totalorder %s103, %s117
      %p119 = scmp.eq.s32.totalorder %s25, 0
      %p120 = por %p118, %p119
      %s121 = ssub.s32 %s19, %s26
      %p122 = scmp.eq.s32.totalorder %s121, 0
      %s124 = sadd.s32 %s123, 1
      %s125 = scalar_select %p122, %s123, %s124
      %p128 = pneg %p122
      %p129 = scmp.eq.s32.totalorder %s19, 1
      %p130 = por %p128, %p129
      %p131 = scmp.ne.s32.totalorder %s123, %s126
      %p132 = scmp.eq.s32.totalorder %s19, 0
      %p133 = por %p131, %p132
      %p134 = scmp.ne.s32.totalorder %s123, %s126
      %p135 = scmp.eq.s32.totalorder %s24, 1
      %p136 = por %p134, %p135
      %p137 = scmp.ne.s32.totalorder %s126, %s127
      %p138 = scmp.eq.s32.totalorder %s24, 0
      %p139 = por %p137, %p138
      %p140 = scmp.ne.s32.totalorder %s126, %s127
      %p141 = scmp.eq.s32.totalorder %s25, 1
      %p142 = por %p140, %p141
      %p144 = scmp.ne.s32.totalorder %s127, %s143
      %p145 = scmp.eq.s32.totalorder %s25, 0
      %p146 = por %p144, %p145
      %p147 = scmp.le.s32.totalorder 1, %s19
      %p148 = scmp.lt.s32.totalorder %s19, 3
      %p149 = pnand %p147, %p148
      %p150 = pneg %p149
      // Predicated region
      $region9: #{tpu_custom_call.1} parent=5 // pred_check
        _
      $region10: #{tpu_custom_call.1} parent=5 // pred_check_branch
        %152 = sbr.rel (%p149) target = $region12
      $region11: #{tpu_custom_call.1} parent=5 // pred_region
        %s153 = ssub.s32 %s19, 1
        // Predicated region
        $region13: #{tpu_custom_call.1} parent=11 // pred_check
          %p154 = pneg %p92
        $region14: #{tpu_custom_call.1} parent=11 // pred_check_branch
          %156 = sbr.rel (%p154) target = $region16
        $region15: #{tpu_custom_call.1} parent=11 // pred_region
          %s158 = ssub.s32 10240, 10240
          %159 = vsyncadd [#allocation6], %s158
          %s160 = sshll.u32 [#allocation7], 4
          %s161 = int_to_ptr.vmem [resolvable:$true] %s160
          %166 = dma.hbm_to_vmem [thread:$0]  %s2, 10240, %s161, [#allocation6], 320, 320, 20
        $region16: #{tpu_custom_call.1} parent=11 // pred_fallthru
          _
        // Predicated region
        $region17: #{tpu_custom_call.1} parent=11 // pred_check
          %p167 = pneg %p113
        $region18: #{tpu_custom_call.1} parent=11 // pred_check_branch
          %169 = sbr.rel (%p167) target = $region20
        $region19: #{tpu_custom_call.1} parent=11 // pred_region
          _
        $region20: #{tpu_custom_call.1} parent=11 // pred_fallthru
          _
      $region12: #{tpu_custom_call.1} parent=5 // pred_fallthru
        _
      %p170 = scmp.lt.s32.totalorder %s19, 2
      // Predicated region
      $region21: #{tpu_custom_call.1} parent=5 // pred_check
        %p171 = pneg %p170
      $region22: #{tpu_custom_call.1} parent=5 // pred_check_branch
        %173 = sbr.rel (%p171) target = $region24
      $region23: #{tpu_custom_call.1} parent=5 // pred_region
        // Predicated region
        $region25: #{tpu_custom_call.1} parent=23 // pred_check
          %p174 = pneg %p39
        $region26: #{tpu_custom_call.1} parent=23 // pred_check_branch
          %176 = sbr.rel (%p174) target = $region28
        $region27: #{tpu_custom_call.1} parent=23 // pred_region
          %s177 = sand.u32 %s29, 1
          %s178 = scalar_lea.sflag [#allocation3], %s177
          %s179 = sand.u32 %s29, 1
          %s180 = smul.addr %s179, 32
          %s181 = scalar_lea.vmem [#allocation2], %s180
          %s182 = smul.u32 2, %s19
          %s184 = ssub.s32 512, 512
          %185 = vsyncadd %s178, %s184
          %s186 = smul.addr %s182, 2
          %s187 = smul.addr %s186, 128
          %s188 = scalar_lea.hbm %s0, %s187
          %s189 = sshll.u32 %s181, 4
          %s190 = int_to_ptr.vmem [resolvable:$true] %s189
          %195 = dma.hbm_to_vmem [thread:$0]  %s188, 512, %s190, %s178, 256, 256, 16
        $region28: #{tpu_custom_call.1} parent=23 // pred_fallthru
          _
        // Predicated region
        $region29: #{tpu_custom_call.1} parent=23 // pred_check
          %p196 = pneg %p65
        $region30: #{tpu_custom_call.1} parent=23 // pred_check_branch
          %198 = sbr.rel (%p196) target = $region32
        $region31: #{tpu_custom_call.1} parent=23 // pred_region
          %s199 = sand.u32 %s19, 1
          %s200 = scalar_lea.sflag [#allocation6], %s199
          %s201 = sand.u32 %s55, 1
          %s202 = smul.addr %s201, 32
          %s203 = scalar_lea.vmem [#allocation5], %s202
          %s204 = smul.u32 2, %s19
          %s206 = ssub.s32 512, 512
          %207 = vsyncadd %s200, %s206
          %s208 = smul.addr %s204, 2
          %s209 = smul.addr %s208, 128
          %s210 = scalar_lea.hbm %s1, %s209
          %s211 = sshll.u32 %s203, 4
          %s212 = int_to_ptr.vmem [resolvable:$true] %s211
          %217 = dma.hbm_to_vmem [thread:$0]  %s210, 512, %s212, %s200, 256, 256, 16
        $region32: #{tpu_custom_call.1} parent=23 // pred_fallthru
          _
      $region24: #{tpu_custom_call.1} parent=5 // pred_fallthru
        _
      %p218 = scmp.le.s32.totalorder 1, %s19
      %p219 = scmp.lt.s32.totalorder %s19, 3
      %p220 = pnand %p218, %p219
      %p221 = pneg %p220
      // Predicated region
      $region33: #{tpu_custom_call.1} parent=5 // pred_check
        _
      $region34: #{tpu_custom_call.1} parent=5 // pred_check_branch
        %223 = sbr.rel (%p220) target = $region36
      $region35: #{tpu_custom_call.1} parent=5 // pred_region
        %s224 = ssub.s32 %s19, 1
        %s225 = sand.u32 %s32, 1
        %s226 = scalar_lea.sflag [#allocation3], %s225
        %s227 = sand.u32 %s32, 1
        %s228 = smul.addr %s227, 32
        %s229 = scalar_lea.vmem [#allocation2], %s228
        // Predicated region
        $region37: #{tpu_custom_call.1} parent=35 // pred_check
          %p230 = pneg %p45
        $region38: #{tpu_custom_call.1} parent=35 // pred_check_branch
          %232 = sbr.rel (%p230) target = $region40
        $region39: #{tpu_custom_call.1} parent=35 // pred_region
          %233 = dma.done %s226, 512
        $region40: #{tpu_custom_call.1} parent=35 // pred_fallthru
          _
        %s234 = sand.u32 %s24, 1
        %s235 = scalar_lea.sflag [#allocation6], %s234
        %s236 = sand.u32 %s58, 1
        %s237 = smul.addr %s236, 32
        %s238 = scalar_lea.vmem [#allocation5], %s237
        // Predicated region
        $region41: #{tpu_custom_call.1} parent=35 // pred_check
          %p239 = pneg %p71
        $region42: #{tpu_custom_call.1} parent=35 // pred_check_branch
          %241 = sbr.rel (%p239) target = $region44
        $region43: #{tpu_custom_call.1} parent=35 // pred_region
          %242 = dma.done %s235, 512
        $region44: #{tpu_custom_call.1} parent=35 // pred_fallthru
          _
        // Predicated region
        $region45: #{tpu_custom_call.1} parent=35 // pred_check
          %p243 = pneg %p92
        $region46: #{tpu_custom_call.1} parent=35 // pred_check_branch
          %245 = sbr.rel (%p243) target = $region48
        $region47: #{tpu_custom_call.1} parent=35 // pred_region
          %246 = dma.done [#allocation6], 10240
        $region48: #{tpu_custom_call.1} parent=35 // pred_fallthru
          _
        %s247 = sand.u32 %s32, 1
        %s248 = scalar_lea.sflag [#allocation3], %s247
        %s249 = sand.u32 %s32, 1
        %s250 = smul.addr %s249, 32
        %s251 = scalar_lea.vmem [#allocation2], %s250
        %p252 = pneg %p45
        %p253 = pneg %p42
        %s254 = sand.u32 %s24, 1
        %s255 = scalar_lea.sflag [#allocation6], %s254
        %s256 = sand.u32 %s58, 1
        %s257 = smul.addr %s256, 32
        %s258 = scalar_lea.vmem [#allocation5], %s257
        %p259 = pneg %p71
        %p260 = pneg %p68
        %p261 = pneg %p92
        %p262 = pneg %p89
        %p263 = pneg %p113
        %p264 = pneg %p110
        %p265 = pneg %p139
        %p266 = pneg %p136
        %s267 = sand.u32 %s126, 1
        %s268 = scalar_lea.sflag [#allocation4], %s267
        %s269 = sand.u32 %s126, 1
        %s270 = smul.addr %s269, 32
        %s271 = scalar_lea.vmem [#allocation8], %s270
        %s272 = smul.u32 2, %s24
        %s273 = smul.u32 2, %s24
        %s274 = smul.u32 2, %s24
        %v277 = vld [vmem:[%s229 + $0x8] sm:$0xff]
        %v278 = vld [vmem:[%s229 + $0x18] sm:$0xff]
        %v279 = vld [vmem:[%s238 + $0x8] sm:$0xff]
        %v280 = vld [vmem:[%s238 + $0x18] sm:$0xff]
        %v281 = vld [vmem:[#allocation7] sm:$0xff]
        %v282 = vld [vmem:[#allocation7 + $0x8] sm:$0xff]
        %v283 = vld [vmem:[#allocation7 + $0x10] sm:$0xf]
        %v284 = vld [vmem:[#allocation7 + $0x14] sm:$0xff]
        %v285 = vld [vmem:[#allocation7 + $0x1c] sm:$0xff]
        %v286 = vld [vmem:[#allocation7 + $0x24] sm:$0xf]
        %v287 = vld [vmem:[#allocation7 + $0x28] sm:$0xff]
        %v288 = vld [vmem:[#allocation7 + $0x30] sm:$0xff]
        %v289 = vld [vmem:[#allocation7 + $0x38] sm:$0xf]
        %v290 = vld [vmem:[#allocation7 + $0x3c] sm:$0xff]
        %v291 = vld [vmem:[#allocation7 + $0x44] sm:$0xff]
        %v292 = vld [vmem:[#allocation7 + $0x4c] sm:$0xf]
        %v293 = vld [vmem:[#allocation7 + $0x50] sm:$0xff]
        %v294 = vld [vmem:[#allocation7 + $0x58] sm:$0xff]
        %v295 = vld [vmem:[#allocation7 + $0x60] sm:$0xf]
        %v296 = vld [vmem:[#allocation7 + $0x64] sm:$0xff]
        %v297 = vld [vmem:[#allocation7 + $0x6c] sm:$0xff]
        %v298 = vld [vmem:[#allocation7 + $0x74] sm:$0xf]
        %v299 = vld [vmem:[#allocation7 + $0x78] sm:$0xff]
        %v300 = vld [vmem:[#allocation7 + $0x80] sm:$0xff]
        %v301 = vld [vmem:[#allocation7 + $0x88] sm:$0xf]
        %v302 = vld [vmem:[#allocation7 + $0x8c] sm:$0xff]
        %v303 = vld [vmem:[#allocation7 + $0x94] sm:$0xff]
        %v304 = vld [vmem:[#allocation7 + $0x9c] sm:$0xf]
        %v305 = vld [vmem:[#allocation7 + $0xa0] sm:$0xff]
        %v306 = vld [vmem:[#allocation7 + $0xa8] sm:$0xff]
        %v307 = vld [vmem:[#allocation7 + $0xb0] sm:$0xf]
        %v308 = vld [vmem:[#allocation7 + $0xb4] sm:$0xff]
        %v309 = vld [vmem:[#allocation7 + $0xbc] sm:$0xff]
        %v310 = vld [vmem:[#allocation7 + $0xc4] sm:$0xf]
        %v311 = vld [vmem:[#allocation7 + $0xc8] sm:$0xff]
        %v312 = vld [vmem:[#allocation7 + $0xd0] sm:$0xff]
        %v313 = vld [vmem:[#allocation7 + $0xd8] sm:$0xf]
        %v314 = vld [vmem:[#allocation7 + $0xdc] sm:$0xff]
        %v315 = vld [vmem:[#allocation7 + $0xe4] sm:$0xff]
        %v316 = vld [vmem:[#allocation7 + $0xec] sm:$0xf]
        %v317 = vld [vmem:[#allocation7 + $0xf0] sm:$0xff]
        %v318 = vld [vmem:[#allocation7 + $0xf8] sm:$0xff]
        %v319 = vld [vmem:[#allocation7 + $0x100] sm:$0xf]
        %v320 = vld [vmem:[#allocation7 + $0x104] sm:$0xff]
        %v321 = vld [vmem:[#allocation7 + $0x10c] sm:$0xff]
        %v322 = vld [vmem:[#allocation7 + $0x114] sm:$0xf]
        %v323 = vld [vmem:[#allocation7 + $0x118] sm:$0xff]
        %v324 = vld [vmem:[#allocation7 + $0x120] sm:$0xff]
        %v325 = vld [vmem:[#allocation7 + $0x128] sm:$0xf]
        %v326 = vld [vmem:[#allocation7 + $0x12c] sm:$0xff]
        %v327 = vld [vmem:[#allocation7 + $0x134] sm:$0xff]
        %v328 = vld [vmem:[#allocation7 + $0x13c] sm:$0xf]
        %v329 = vld [vmem:[#allocation7 + $0x140] sm:$0xff]
        %v330 = vld [vmem:[#allocation7 + $0x148] sm:$0xff]
        %v331 = vld [vmem:[#allocation7 + $0x150] sm:$0xf]
        %v332 = vld [vmem:[#allocation7 + $0x154] sm:$0xff]
        %v333 = vld [vmem:[#allocation7 + $0x15c] sm:$0xff]
        %v334 = vld [vmem:[#allocation7 + $0x164] sm:$0xf]
        %v335 = vld [vmem:[#allocation7 + $0x168] sm:$0xff]
        %v336 = vld [vmem:[#allocation7 + $0x170] sm:$0xff]
        %v337 = vld [vmem:[#allocation7 + $0x178] sm:$0xf]
        %v338 = vld [vmem:[#allocation7 + $0x17c] sm:$0xff]
        %v339 = vld [vmem:[#allocation7 + $0x184] sm:$0xff]
        %v340 = vld [vmem:[#allocation7 + $0x18c] sm:$0xf]
        %v341 = vld [vmem:[#allocation7 + $0x190] sm:$0xff]
        %v342 = vld [vmem:[#allocation7 + $0x198] sm:$0xff]
        %v343 = vld [vmem:[#allocation7 + $0x1a0] sm:$0xf]
        %v344 = vld [vmem:[#allocation7 + $0x1a4] sm:$0xff]
        %v345 = vld [vmem:[#allocation7 + $0x1ac] sm:$0xff]
        %v346 = vld [vmem:[#allocation7 + $0x1b4] sm:$0xf]
        %v347 = vld [vmem:[#allocation7 + $0x1b8] sm:$0xff]
        %v348 = vld [vmem:[#allocation7 + $0x1c0] sm:$0xff]
        %v349 = vld [vmem:[#allocation7 + $0x1c8] sm:$0xf]
        %v350 = vld [vmem:[#allocation7 + $0x1cc] sm:$0xff]
        %v351 = vld [vmem:[#allocation7 + $0x1d4] sm:$0xff]
        %v352 = vld [vmem:[#allocation7 + $0x1dc] sm:$0xf]
        %v353 = vld [vmem:[#allocation7 + $0x1e0] sm:$0xff]
        %v354 = vld [vmem:[#allocation7 + $0x1e8] sm:$0xff]
        %v355 = vld [vmem:[#allocation7 + $0x1f0] sm:$0xf]
        %v356 = vld [vmem:[#allocation7 + $0x1f4] sm:$0xff]
        %v357 = vld [vmem:[#allocation7 + $0x1fc] sm:$0xff]
        %v358 = vld [vmem:[#allocation7 + $0x204] sm:$0xf]
        %v359 = vld [vmem:[#allocation7 + $0x208] sm:$0xff]
        %v360 = vld [vmem:[#allocation7 + $0x210] sm:$0xff]
        %v361 = vld [vmem:[#allocation7 + $0x218] sm:$0xf]
        %v362 = vld [vmem:[#allocation7 + $0x21c] sm:$0xff]
        %v363 = vld [vmem:[#allocation7 + $0x224] sm:$0xff]
        %v364 = vld [vmem:[#allocation7 + $0x22c] sm:$0xf]
        %v365 = vld [vmem:[#allocation7 + $0x230] sm:$0xff]
        %v366 = vld [vmem:[#allocation7 + $0x238] sm:$0xff]
        %v367 = vld [vmem:[#allocation7 + $0x240] sm:$0xf]
        %v368 = vld [vmem:[#allocation7 + $0x244] sm:$0xff]
        %v369 = vld [vmem:[#allocation7 + $0x24c] sm:$0xff]
        %v370 = vld [vmem:[#allocation7 + $0x254] sm:$0xf]
        %v371 = vld [vmem:[#allocation7 + $0x258] sm:$0xff]
        %v372 = vld [vmem:[#allocation7 + $0x260] sm:$0xff]
        %v373 = vld [vmem:[#allocation7 + $0x268] sm:$0xf]
        %v374 = vld [vmem:[#allocation7 + $0x26c] sm:$0xff]
        %v375 = vld [vmem:[#allocation7 + $0x274] sm:$0xff]
        %v376 = vld [vmem:[#allocation7 + $0x27c] sm:$0xf]
        %v377 = vld [vmem:[%s229] sm:$0xff]
        %v378 = vld [vmem:[%s229 + $0x10] sm:$0xff]
        %v379 = vpack.c.bf16 %v378, %v377
        %v380 = vld [vmem:[%s238] sm:$0xff]
        %v381 = vld [vmem:[%s238 + $0x10] sm:$0xff]
        %v382 = vpack.c.bf16 %v381, %v380
        %v431 = vunpack.c.l.b16 %v329
        %v432 = vunpack.c.h.b16 %v329
        %v433 = vunpack.c.l.b16 %v330
        %v434 = vunpack.c.h.b16 %v330
        %v435 = vunpack.c.l.b16 %v331
        %v436 = vunpack.c.l.b16 %v332
        %v437 = vunpack.c.h.b16 %v332
        %v438 = vunpack.c.l.b16 %v333
        %v439 = vunpack.c.h.b16 %v333
        %v440 = vunpack.c.l.b16 %v334
        %v441 = vunpack.c.l.b16 %v335
        %v442 = vunpack.c.h.b16 %v335
        %v443 = vunpack.c.l.b16 %v336
        %v444 = vunpack.c.h.b16 %v336
        %v445 = vunpack.c.l.b16 %v337
        %v446 = vunpack.c.l.b16 %v338
        %v447 = vunpack.c.h.b16 %v338
        %v448 = vunpack.c.l.b16 %v339
        %v449 = vunpack.c.h.b16 %v339
        %v450 = vunpack.c.l.b16 %v340
        %v451 = vunpack.c.l.b16 %v341
        %v452 = vunpack.c.h.b16 %v341
        %v453 = vunpack.c.l.b16 %v342
        %v454 = vunpack.c.h.b16 %v342
        %v455 = vunpack.c.l.b16 %v343
        %v456 = vunpack.c.l.b16 %v344
        %v457 = vunpack.c.h.b16 %v344
        %v458 = vunpack.c.l.b16 %v345
        %v459 = vunpack.c.h.b16 %v345
        %v460 = vunpack.c.l.b16 %v346
        %v461 = vunpack.c.l.b16 %v347
        %v462 = vunpack.c.h.b16 %v347
        %v463 = vunpack.c.l.b16 %v348
        %v464 = vunpack.c.h.b16 %v348
        %v465 = vunpack.c.l.b16 %v349
        %v466 = vunpack.c.l.b16 %v350
        %v467 = vunpack.c.h.b16 %v350
        %v468 = vunpack.c.l.b16 %v351
        %v469 = vunpack.c.h.b16 %v351
        %v470 = vunpack.c.l.b16 %v352
        %v471 = vunpack.c.l.b16 %v353
        %v472 = vunpack.c.h.b16 %v353
        %v473 = vunpack.c.l.b16 %v354
        %v474 = vunpack.c.h.b16 %v354
        %v475 = vunpack.c.l.b16 %v355
        %v476 = vunpack.c.l.b16 %v356
        %v477 = vunpack.c.h.b16 %v356
        %v478 = vunpack.c.l.b16 %v357
        %v479 = vunpack.c.h.b16 %v357
        %v480 = vunpack.c.l.b16 %v358
        %v481 = vunpack.c.l.b16 %v359
        %v482 = vunpack.c.h.b16 %v359
        %v483 = vunpack.c.l.b16 %v360
        %v484 = vunpack.c.h.b16 %v360
        %v485 = vunpack.c.l.b16 %v361
        %v486 = vunpack.c.l.b16 %v362
        %v487 = vunpack.c.h.b16 %v362
        %v488 = vunpack.c.l.b16 %v363
        %v489 = vunpack.c.h.b16 %v363
        %v490 = vunpack.c.l.b16 %v364
        %v491 = vunpack.c.l.b16 %v365
        %v492 = vunpack.c.h.b16 %v365
        %v493 = vunpack.c.l.b16 %v366
        %v494 = vunpack.c.h.b16 %v366
        %v495 = vunpack.c.l.b16 %v367
        %v496 = vunpack.c.l.b16 %v368
        %v497 = vunpack.c.h.b16 %v368
        %v498 = vunpack.c.l.b16 %v369
        %v499 = vunpack.c.h.b16 %v369
        %v500 = vunpack.c.l.b16 %v370
        %v501 = vunpack.c.l.b16 %v371
        %v502 = vunpack.c.h.b16 %v371
        %v503 = vunpack.c.l.b16 %v372
        %v504 = vunpack.c.h.b16 %v372
        %v505 = vunpack.c.l.b16 %v373
        %v506 = vunpack.c.l.b16 %v374
        %v507 = vunpack.c.h.b16 %v374
        %v508 = vunpack.c.l.b16 %v375
        %v509 = vunpack.c.h.b16 %v375
        %v510 = vunpack.c.l.b16 %v376
        %v511 = vpack.c.b16 %v436, %v431
        %v512 = vpack.c.b16 %v437, %v432
        %v513 = vpack.c.b16 %v438, %v433
        %v514 = vpack.c.b16 %v439, %v434
        %v515 = vpack.c.b16 %v440, %v435
        %v516 = vpack.c.b16 %v446, %v441
        %v517 = vpack.c.b16 %v447, %v442
        %v518 = vpack.c.b16 %v448, %v443
        %v519 = vpack.c.b16 %v449, %v444
        %v520 = vpack.c.b16 %v450, %v445
        %v521 = vpack.c.b16 %v456, %v451
        %v522 = vpack.c.b16 %v457, %v452
        %v523 = vpack.c.b16 %v458, %v453
        %v524 = vpack.c.b16 %v459, %v454
        %v525 = vpack.c.b16 %v460, %v455
        %v526 = vpack.c.b16 %v466, %v461
        %v527 = vpack.c.b16 %v467, %v462
        %v528 = vpack.c.b16 %v468, %v463
        %v529 = vpack.c.b16 %v469, %v464
        %v530 = vpack.c.b16 %v470, %v465
        %v531 = vpack.c.b16 %v476, %v471
        %v532 = vpack.c.b16 %v477, %v472
        %v533 = vpack.c.b16 %v478, %v473
        %v534 = vpack.c.b16 %v479, %v474
        %v535 = vpack.c.b16 %v480, %v475
        %v536 = vpack.c.b16 %v486, %v481
        %v537 = vpack.c.b16 %v487, %v482
        %v538 = vpack.c.b16 %v488, %v483
        %v539 = vpack.c.b16 %v489, %v484
        %v540 = vpack.c.b16 %v490, %v485
        %v541 = vpack.c.b16 %v496, %v491
        %v542 = vpack.c.b16 %v497, %v492
        %v543 = vpack.c.b16 %v498, %v493
        %v544 = vpack.c.b16 %v499, %v494
        %v545 = vpack.c.b16 %v500, %v495
        %v546 = vpack.c.b16 %v506, %v501
        %v547 = vpack.c.b16 %v507, %v502
        %v548 = vpack.c.b16 %v508, %v503
        %v549 = vpack.c.b16 %v509, %v504
        %v550 = vpack.c.b16 %v510, %v505
        %591 = vmatprep.subr.bf16.mxu0 %v512
        %592 = vmatpush1.bf16.msra.mxu0 %v511
        %593 = vmatprep.subr.bf16.mxu0 %v517
        %594 = vmatpush1.bf16.msra.mxu0 %v516
        %595 = vmatprep.subr.bf16.mxu0 %v522
        %596 = vmatpush1.bf16.msra.mxu0 %v521
        %597 = vmatprep.subr.bf16.mxu0 %v527
        %598 = vmatpush1.bf16.msra.mxu0 %v526
        %599 = vmatprep.subr.bf16.mxu0 %v532
        %600 = vmatpush1.bf16.msra.mxu0 %v531
        %601 = vmatprep.subr.bf16.mxu0 %v537
        %602 = vmatpush1.bf16.msra.mxu0 %v536
        %603 = vmatprep.subr.bf16.mxu0 %v542
        %604 = vmatpush1.bf16.msra.mxu0 %v541
        %605 = vmatprep.subr.bf16.mxu0 %v547
        %606 = vmatpush1.bf16.msra.mxu0 %v546
        %607 = vmatprep.subr.bf16.mxu0 0
        %608 = vmatpush1.bf16.msra.mxu0 0
        %609 = vmatprep.subr.bf16.mxu0 0
        %610 = vmatpush1.bf16.msra.mxu0 0
        %611 = vmatprep.subr.bf16.mxu0 0
        %612 = vmatpush1.bf16.msra.mxu0 0
        %613 = vmatprep.subr.bf16.mxu0 0
        %614 = vmatpush1.bf16.msra.mxu0 0
        %615 = vmatprep.subr.bf16.mxu0 0
        %616 = vmatpush1.bf16.msra.mxu0 0
        %617 = vmatprep.subr.bf16.mxu0 0
        %618 = vmatpush1.bf16.msra.mxu0 0
        %619 = vmatprep.subr.bf16.mxu0 0
        %620 = vmatpush1.bf16.msra.mxu0 0
        %621 = vmatprep.subr.bf16.mxu0 0
        %622 = vmatpush1.bf16.msra.mxu0 0
        %623 = vmatprep.mubr.bf16.mxu0 0
        %624 = vmatmul.mubr.bf16.gmra.mrb[0].mxu0 %v382
        %v625 = vpop.f32.mrb[0].mxu0
        %v626 = vadd.f32 0.0, %v625
        %v627 = vpop.f32.mrb[0].mxu0
        %v628 = vadd.f32 0.0, %v627
        %v629 = vpop.f32.mrb[0].mxu0
        %v630 = vadd.f32 0.0, %v629
        %v631 = vpop.f32.mrb[0].mxu0
        %v632 = vadd.f32 0.0, %v631
        %633 = vdwg.mxu0
        %634 = vmatprep.subr.bf16.mxu0 %v514
        %635 = vmatpush1.bf16.msra.mxu0 %v513
        %636 = vmatprep.subr.bf16.mxu0 %v519
        %637 = vmatpush1.bf16.msra.mxu0 %v518
        %638 = vmatprep.subr.bf16.mxu0 %v524
        %639 = vmatpush1.bf16.msra.mxu0 %v523
        %640 = vmatprep.subr.bf16.mxu0 %v529
        %641 = vmatpush1.bf16.msra.mxu0 %v528
        %642 = vmatprep.subr.bf16.mxu0 %v534
        %643 = vmatpush1.bf16.msra.mxu0 %v533
        %644 = vmatprep.subr.bf16.mxu0 %v539
        %645 = vmatpush1.bf16.msra.mxu0 %v538
        %646 = vmatprep.subr.bf16.mxu0 %v544
        %647 = vmatpush1.bf16.msra.mxu0 %v543
        %648 = vmatprep.subr.bf16.mxu0 %v549
        %649 = vmatpush1.bf16.msra.mxu0 %v548
        %650 = vmatprep.subr.bf16.mxu0 0
        %651 = vmatpush1.bf16.msra.mxu0 0
        %652 = vmatprep.subr.bf16.mxu0 0
        %653 = vmatpush1.bf16.msra.mxu0 0
        %654 = vmatprep.subr.bf16.mxu0 0
        %655 = vmatpush1.bf16.msra.mxu0 0
        %656 = vmatprep.subr.bf16.mxu0 0
        %657 = vmatpush1.bf16.msra.mxu0 0
        %658 = vmatprep.subr.bf16.mxu0 0
        %659 = vmatpush1.bf16.msra.mxu0 0
        %660 = vmatprep.subr.bf16.mxu0 0
        %661 = vmatpush1.bf16.msra.mxu0 0
        %662 = vmatprep.subr.bf16.mxu0 0
        %663 = vmatpush1.bf16.msra.mxu0 0
        %664 = vmatprep.subr.bf16.mxu0 0
        %665 = vmatpush1.bf16.msra.mxu0 0
        %666 = vmatprep.mubr.bf16.mxu0 0
        %667 = vmatmul.mubr.bf16.gmra.mrb[0].mxu0 %v382
        %v668 = vpop.f32.mrb[0].mxu0
        %v669 = vadd.f32 0.0, %v668
        %v670 = vpop.f32.mrb[0].mxu0
        %v671 = vadd.f32 0.0, %v670
        %v672 = vpop.f32.mrb[0].mxu0
        %v673 = vadd.f32 0.0, %v672
        %v674 = vpop.f32.mrb[0].mxu0
        %v675 = vadd.f32 0.0, %v674
        %676 = vdwg.mxu0
        %677 = vmatprep.subr.bf16.mxu0 0
        %678 = vmatpush1.bf16.msra.mxu0 %v515
        %679 = vmatprep.subr.bf16.mxu0 0
        %680 = vmatpush1.bf16.msra.mxu0 %v520
        %681 = vmatprep.subr.bf16.mxu0 0
        %682 = vmatpush1.bf16.msra.mxu0 %v525
        %683 = vmatprep.subr.bf16.mxu0 0
        %684 = vmatpush1.bf16.msra.mxu0 %v530
        %685 = vmatprep.subr.bf16.mxu0 0
        %686 = vmatpush1.bf16.msra.mxu0 %v535
        %687 = vmatprep.subr.bf16.mxu0 0
        %688 = vmatpush1.bf16.msra.mxu0 %v540
        %689 = vmatprep.subr.bf16.mxu0 0
        %690 = vmatpush1.bf16.msra.mxu0 %v545
        %691 = vmatprep.subr.bf16.mxu0 0
        %692 = vmatpush1.bf16.msra.mxu0 %v550
        %693 = vmatprep.subr.bf16.mxu0 0
        %694 = vmatpush1.bf16.msra.mxu0 0
        %695 = vmatprep.subr.bf16.mxu0 0
        %696 = vmatpush1.bf16.msra.mxu0 0
        %697 = vmatprep.subr.bf16.mxu0 0
        %698 = vmatpush1.bf16.msra.mxu0 0
        %699 = vmatprep.subr.bf16.mxu0 0
        %700 = vmatpush1.bf16.msra.mxu0 0
        %701 = vmatprep.subr.bf16.mxu0 0
        %702 = vmatpush1.bf16.msra.mxu0 0
        %703 = vmatprep.subr.bf16.mxu0 0
        %704 = vmatpush1.bf16.msra.mxu0 0
        %705 = vmatprep.subr.bf16.mxu0 0
        %706 = vmatpush1.bf16.msra.mxu0 0
        %707 = vmatprep.subr.bf16.mxu0 0
        %708 = vmatpush1.bf16.msra.mxu0 0
        %709 = vmatprep.mubr.bf16.mxu0 0
        %710 = vmatmul.mubr.bf16.gmra.mrb[0].mxu0 %v382
        %v711 = vpop.f32.mrb[0].mxu0
        %v712 = vadd.f32 0.0, %v711
        %v713 = vpop.f32.mrb[0].mxu0
        %v714 = vpop.f32.mrb[0].mxu0
        %v715 = vadd.f32 0.0, %v714
        %v716 = vpop.f32.mrb[0].mxu0
        %717 = vdwg.mxu0
        %v766 = vunpack.c.l.b16 %v281
        %v767 = vunpack.c.h.b16 %v281
        %v768 = vunpack.c.l.b16 %v282
        %v769 = vunpack.c.h.b16 %v282
        %v770 = vunpack.c.l.b16 %v283
        %v771 = vunpack.c.l.b16 %v284
        %v772 = vunpack.c.h.b16 %v284
        %v773 = vunpack.c.l.b16 %v285
        %v774 = vunpack.c.h.b16 %v285
        %v775 = vunpack.c.l.b16 %v286
        %v776 = vunpack.c.l.b16 %v287
        %v777 = vunpack.c.h.b16 %v287
        %v778 = vunpack.c.l.b16 %v288
        %v779 = vunpack.c.h.b16 %v288
        %v780 = vunpack.c.l.b16 %v289
        %v781 = vunpack.c.l.b16 %v290
        %v782 = vunpack.c.h.b16 %v290
        %v783 = vunpack.c.l.b16 %v291
        %v784 = vunpack.c.h.b16 %v291
        %v785 = vunpack.c.l.b16 %v292
        %v786 = vunpack.c.l.b16 %v293
        %v787 = vunpack.c.h.b16 %v293
        %v788 = vunpack.c.l.b16 %v294
        %v789 = vunpack.c.h.b16 %v294
        %v790 = vunpack.c.l.b16 %v295
        %v791 = vunpack.c.l.b16 %v296
        %v792 = vunpack.c.h.b16 %v296
        %v793 = vunpack.c.l.b16 %v297
        %v794 = vunpack.c.h.b16 %v297
        %v795 = vunpack.c.l.b16 %v298
        %v796 = vunpack.c.l.b16 %v299
        %v797 = vunpack.c.h.b16 %v299
        %v798 = vunpack.c.l.b16 %v300
        %v799 = vunpack.c.h.b16 %v300
        %v800 = vunpack.c.l.b16 %v301
        %v801 = vunpack.c.l.b16 %v302
        %v802 = vunpack.c.h.b16 %v302
        %v803 = vunpack.c.l.b16 %v303
        %v804 = vunpack.c.h.b16 %v303
        %v805 = vunpack.c.l.b16 %v304
        %v806 = vunpack.c.l.b16 %v305
        %v807 = vunpack.c.h.b16 %v305
        %v808 = vunpack.c.l.b16 %v306
        %v809 = vunpack.c.h.b16 %v306
        %v810 = vunpack.c.l.b16 %v307
        %v811 = vunpack.c.l.b16 %v308
        %v812 = vunpack.c.h.b16 %v308
        %v813 = vunpack.c.l.b16 %v309
        %v814 = vunpack.c.h.b16 %v309
        %v815 = vunpack.c.l.b16 %v310
        %v816 = vunpack.c.l.b16 %v311
        %v817 = vunpack.c.h.b16 %v311
        %v818 = vunpack.c.l.b16 %v312
        %v819 = vunpack.c.h.b16 %v312
        %v820 = vunpack.c.l.b16 %v313
        %v821 = vunpack.c.l.b16 %v314
        %v822 = vunpack.c.h.b16 %v314
        %v823 = vunpack.c.l.b16 %v315
        %v824 = vunpack.c.h.b16 %v315
        %v825 = vunpack.c.l.b16 %v316
        %v826 = vunpack.c.l.b16 %v317
        %v827 = vunpack.c.h.b16 %v317
        %v828 = vunpack.c.l.b16 %v318
        %v829 = vunpack.c.h.b16 %v318
        %v830 = vunpack.c.l.b16 %v319
        %v831 = vunpack.c.l.b16 %v320
        %v832 = vunpack.c.h.b16 %v320
        %v833 = vunpack.c.l.b16 %v321
        %v834 = vunpack.c.h.b16 %v321
        %v835 = vunpack.c.l.b16 %v322
        %v836 = vunpack.c.l.b16 %v323
        %v837 = vunpack.c.h.b16 %v323
        %v838 = vunpack.c.l.b16 %v324
        %v839 = vunpack.c.h.b16 %v324
        %v840 = vunpack.c.l.b16 %v325
        %v841 = vunpack.c.l.b16 %v326
        %v842 = vunpack.c.h.b16 %v326
        %v843 = vunpack.c.l.b16 %v327
        %v844 = vunpack.c.h.b16 %v327
        %v845 = vunpack.c.l.b16 %v328
        %v846 = vpack.c.b16 %v771, %v766
        %v847 = vpack.c.b16 %v772, %v767
        %v848 = vpack.c.b16 %v773, %v768
        %v849 = vpack.c.b16 %v774, %v769
        %v850 = vpack.c.b16 %v775, %v770
        %v851 = vpack.c.b16 %v781, %v776
        %v852 = vpack.c.b16 %v782, %v777
        %v853 = vpack.c.b16 %v783, %v778
        %v854 = vpack.c.b16 %v784, %v779
        %v855 = vpack.c.b16 %v785, %v780
        %v856 = vpack.c.b16 %v791, %v786
        %v857 = vpack.c.b16 %v792, %v787
        %v858 = vpack.c.b16 %v793, %v788
        %v859 = vpack.c.b16 %v794, %v789
        %v860 = vpack.c.b16 %v795, %v790
        %v861 = vpack.c.b16 %v801, %v796
        %v862 = vpack.c.b16 %v802, %v797
        %v863 = vpack.c.b16 %v803, %v798
        %v864 = vpack.c.b16 %v804, %v799
        %v865 = vpack.c.b16 %v805, %v800
        %v866 = vpack.c.b16 %v811, %v806
        %v867 = vpack.c.b16 %v812, %v807
        %v868 = vpack.c.b16 %v813, %v808
        %v869 = vpack.c.b16 %v814, %v809
        %v870 = vpack.c.b16 %v815, %v810
        %v871 = vpack.c.b16 %v821, %v816
        %v872 = vpack.c.b16 %v822, %v817
        %v873 = vpack.c.b16 %v823, %v818
        %v874 = vpack.c.b16 %v824, %v819
        %v875 = vpack.c.b16 %v825, %v820
        %v876 = vpack.c.b16 %v831, %v826
        %v877 = vpack.c.b16 %v832, %v827
        %v878 = vpack.c.b16 %v833, %v828
        %v879 = vpack.c.b16 %v834, %v829
        %v880 = vpack.c.b16 %v835, %v830
        %v881 = vpack.c.b16 %v841, %v836
        %v882 = vpack.c.b16 %v842, %v837
        %v883 = vpack.c.b16 %v843, %v838
        %v884 = vpack.c.b16 %v844, %v839
        %v885 = vpack.c.b16 %v845, %v840
        %926 = vmatprep.subr.bf16.mxu0 %v847
        %927 = vmatpush1.bf16.msra.mxu0 %v846
        %928 = vmatprep.subr.bf16.mxu0 %v852
        %929 = vmatpush1.bf16.msra.mxu0 %v851
        %930 = vmatprep.subr.bf16.mxu0 %v857
        %931 = vmatpush1.bf16.msra.mxu0 %v856
        %932 = vmatprep.subr.bf16.mxu0 %v862
        %933 = vmatpush1.bf16.msra.mxu0 %v861
        %934 = vmatprep.subr.bf16.mxu0 %v867
        %935 = vmatpush1.bf16.msra.mxu0 %v866
        %936 = vmatprep.subr.bf16.mxu0 %v872
        %937 = vmatpush1.bf16.msra.mxu0 %v871
        %938 = vmatprep.subr.bf16.mxu0 %v877
        %939 = vmatpush1.bf16.msra.mxu0 %v876
        %940 = vmatprep.subr.bf16.mxu0 %v882
        %941 = vmatpush1.bf16.msra.mxu0 %v881
        %942 = vmatprep.subr.bf16.mxu0 0
        %943 = vmatpush1.bf16.msra.mxu0 0
        %944 = vmatprep.subr.bf16.mxu0 0
        %945 = vmatpush1.bf16.msra.mxu0 0
        %946 = vmatprep.subr.bf16.mxu0 0
        %947 = vmatpush1.bf16.msra.mxu0 0
        %948 = vmatprep.subr.bf16.mxu0 0
        %949 = vmatpush1.bf16.msra.mxu0 0
        %950 = vmatprep.subr.bf16.mxu0 0
        %951 = vmatpush1.bf16.msra.mxu0 0
        %952 = vmatprep.subr.bf16.mxu0 0
        %953 = vmatpush1.bf16.msra.mxu0 0
        %954 = vmatprep.subr.bf16.mxu0 0
        %955 = vmatpush1.bf16.msra.mxu0 0
        %956 = vmatprep.subr.bf16.mxu0 0
        %957 = vmatpush1.bf16.msra.mxu0 0
        %958 = vmatprep.mubr.bf16.mxu0 0
        %959 = vmatmul.mubr.bf16.gmra.mrb[0].mxu0 %v379
        %v960 = vpop.f32.mrb[0].mxu0
        %v961 = vadd.f32 %v626, %v960
        %v962 = vpop.f32.mrb[0].mxu0
        %v963 = vadd.f32 %v628, %v962
        %v964 = vpop.f32.mrb[0].mxu0
        %v965 = vadd.f32 %v630, %v964
        %v966 = vpop.f32.mrb[0].mxu0
        %v967 = vadd.f32 %v632, %v966
        %968 = vdwg.mxu0
        %969 = vmatprep.subr.bf16.mxu0 %v849
        %970 = vmatpush1.bf16.msra.mxu0 %v848
        %971 = vmatprep.subr.bf16.mxu0 %v854
        %972 = vmatpush1.bf16.msra.mxu0 %v853
        %973 = vmatprep.subr.bf16.mxu0 %v859
        %974 = vmatpush1.bf16.msra.mxu0 %v858
        %975 = vmatprep.subr.bf16.mxu0 %v864
        %976 = vmatpush1.bf16.msra.mxu0 %v863
        %977 = vmatprep.subr.bf16.mxu0 %v869
        %978 = vmatpush1.bf16.msra.mxu0 %v868
        %979 = vmatprep.subr.bf16.mxu0 %v874
        %980 = vmatpush1.bf16.msra.mxu0 %v873
        %981 = vmatprep.subr.bf16.mxu0 %v879
        %982 = vmatpush1.bf16.msra.mxu0 %v878
        %983 = vmatprep.subr.bf16.mxu0 %v884
        %984 = vmatpush1.bf16.msra.mxu0 %v883
        %985 = vmatprep.subr.bf16.mxu0 0
        %986 = vmatpush1.bf16.msra.mxu0 0
        %987 = vmatprep.subr.bf16.mxu0 0
        %988 = vmatpush1.bf16.msra.mxu0 0
        %989 = vmatprep.subr.bf16.mxu0 0
        %990 = vmatpush1.bf16.msra.mxu0 0
        %991 = vmatprep.subr.bf16.mxu0 0
        %992 = vmatpush1.bf16.msra.mxu0 0
        %993 = vmatprep.subr.bf16.mxu0 0
        %994 = vmatpush1.bf16.msra.mxu0 0
        %995 = vmatprep.subr.bf16.mxu0 0
        %996 = vmatpush1.bf16.msra.mxu0 0
        %997 = vmatprep.subr.bf16.mxu0 0
        %998 = vmatpush1.bf16.msra.mxu0 0
        %999 = vmatprep.subr.bf16.mxu0 0
        %1000 = vmatpush1.bf16.msra.mxu0 0
        %1001 = vmatprep.mubr.bf16.mxu0 0
        %1002 = vmatmul.mubr.bf16.gmra.mrb[0].mxu0 %v379
        %v1003 = vpop.f32.mrb[0].mxu0
        %v1004 = vadd.f32 %v669, %v1003
        %v1005 = vpop.f32.mrb[0].mxu0
        %v1006 = vadd.f32 %v671, %v1005
        %v1007 = vpop.f32.mrb[0].mxu0
        %v1008 = vadd.f32 %v673, %v1007
        %v1009 = vpop.f32.mrb[0].mxu0
        %v1010 = vadd.f32 %v675, %v1009
        %1011 = vdwg.mxu0
        %1012 = vmatprep.subr.bf16.mxu0 0
        %1013 = vmatpush1.bf16.msra.mxu0 %v850
        %1014 = vmatprep.subr.bf16.mxu0 0
        %1015 = vmatpush1.bf16.msra.mxu0 %v855
        %1016 = vmatprep.subr.bf16.mxu0 0
        %1017 = vmatpush1.bf16.msra.mxu0 %v860
        %1018 = vmatprep.subr.bf16.mxu0 0
        %1019 = vmatpush1.bf16.msra.mxu0 %v865
        %1020 = vmatprep.subr.bf16.mxu0 0
        %1021 = vmatpush1.bf16.msra.mxu0 %v870
        %1022 = vmatprep.subr.bf16.mxu0 0
        %1023 = vmatpush1.bf16.msra.mxu0 %v875
        %1024 = vmatprep.subr.bf16.mxu0 0
        %1025 = vmatpush1.bf16.msra.mxu0 %v880
        %1026 = vmatprep.subr.bf16.mxu0 0
        %1027 = vmatpush1.bf16.msra.mxu0 %v885
        %1028 = vmatprep.subr.bf16.mxu0 0
        %1029 = vmatpush1.bf16.msra.mxu0 0
        %1030 = vmatprep.subr.bf16.mxu0 0
        %1031 = vmatpush1.bf16.msra.mxu0 0
        %1032 = vmatprep.subr.bf16.mxu0 0
        %1033 = vmatpush1.bf16.msra.mxu0 0
        %1034 = vmatprep.subr.bf16.mxu0 0
        %1035 = vmatpush1.bf16.msra.mxu0 0
        %1036 = vmatprep.subr.bf16.mxu0 0
        %1037 = vmatpush1.bf16.msra.mxu0 0
        %1038 = vmatprep.subr.bf16.mxu0 0
        %1039 = vmatpush1.bf16.msra.mxu0 0
        %1040 = vmatprep.subr.bf16.mxu0 0
        %1041 = vmatpush1.bf16.msra.mxu0 0
        %1042 = vmatprep.subr.bf16.mxu0 0
        %1043 = vmatpush1.bf16.msra.mxu0 0
        %1044 = vmatprep.mubr.bf16.mxu0 0
        %1045 = vmatmul.mubr.bf16.gmra.mrb[0].mxu0 %v379
        %v1046 = vpop.f32.mrb[0].mxu0
        %v1047 = vadd.f32 %v712, %v1046
        %v1048 = vpop.f32.mrb[0].mxu0
        %v1049 = vpop.f32.mrb[0].mxu0
        %v1050 = vadd.f32 %v715, %v1049
        %v1051 = vpop.f32.mrb[0].mxu0
        %1052 = vdwg.mxu0
        %v1053 = vld [vmem:[%s3] sm:$0x1f]
        %v1055 = vlaneseq
        %v1056 = vshrl.u32 %v1055, 7
        %v1057 = vsub.s32 0, %v1056
        %v1058 = vrot.slane %v1053, %v1057
        %v1059 = vlaneseq
        %v1060 = vshrl.u32 %v1059, 7
        %v1061 = vsub.s32 1, %v1060
        %v1062 = vrot.slane %v1053, %v1061
        %v1063 = vlaneseq
        %v1064 = vshrl.u32 %v1063, 7
        %v1065 = vsub.s32 2, %v1064
        %v1066 = vrot.slane %v1053, %v1065
        %v1067 = vlaneseq
        %v1068 = vshrl.u32 %v1067, 7
        %v1069 = vsub.s32 3, %v1068
        %v1070 = vrot.slane %v1053, %v1069
        %v1071 = vlaneseq
        %v1072 = vshrl.u32 %v1071, 7
        %v1073 = vsub.s32 4, %v1072
        %v1074 = vrot.slane %v1053, %v1073
        %v1080 = vadd.f32 %v961, %v1058
        %v1081 = vadd.f32 %v963, %v1062
        %v1082 = vadd.f32 %v1004, %v1066
        %v1083 = vadd.f32 %v1006, %v1070
        %v1084 = vadd.f32 %v1047, %v1074
        %v1085 = vadd.f32 %v965, %v1058
        %v1086 = vadd.f32 %v967, %v1062
        %v1087 = vadd.f32 %v1008, %v1066
        %v1088 = vadd.f32 %v1010, %v1070
        %v1089 = vadd.f32 %v1050, %v1074
        %v1090 = vpack.c.bf16 %v1085, %v1080
        %v1091 = vpack.c.bf16 %v1086, %v1081
        %v1092 = vpack.c.bf16 %v1087, %v1082
        %v1093 = vpack.c.bf16 %v1088, %v1083
        %v1094 = vpack.c.bf16 %v1089, %v1084
        %v1095 = vxor.u32 %v1090, 2147516416
        %v1096 = vxor.u32 %v1091, 2147516416
        %v1097 = vxor.u32 %v1092, 2147516416
        %v1098 = vxor.u32 %v1093, 2147516416
        %v1100 = vmul.bf16 %v1095, 1069105081
        %v1101 = vpow.bf16.pop %v1100
        %v1103 = vmul.bf16 %v1096, 1069105081
        %v1104 = vpow.bf16.pop %v1103
        %v1106 = vmul.bf16 %v1097, 1069105081
        %v1107 = vpow.bf16.pop %v1106
        %v1109 = vmul.bf16 %v1098, 1069105081
        %v1110 = vpow.bf16.pop %v1109
        %v1111 = vadd.bf16 %v1101, 1065369472
        %v1112 = vadd.bf16 %v1104, 1065369472
        %v1113 = vadd.bf16 %v1107, 1065369472
        %v1114 = vadd.bf16 %v1110, 1065369472
        %v1115 = vrcp.bf16.pop %v1111
        %v1116 = vmul.bf16 1065369472, %v1115
        %v1117 = vrcp.bf16.pop %v1112
        %v1118 = vmul.bf16 1065369472, %v1117
        %v1119 = vrcp.bf16.pop %v1113
        %v1120 = vmul.bf16 1065369472, %v1119
        %v1121 = vrcp.bf16.pop %v1114
        %v1122 = vmul.bf16 1065369472, %v1121
        %v1123 = vunpack.c.l.bf16 %v1116
        %v1124 = vunpack.c.h.bf16 %v1116
        %v1125 = vunpack.c.l.bf16 %v1118
        %v1126 = vunpack.c.h.bf16 %v1118
        %v1127 = vunpack.c.l.bf16 %v1120
        %v1128 = vunpack.c.h.bf16 %v1120
        %v1129 = vunpack.c.l.bf16 %v1122
        %v1130 = vunpack.c.h.bf16 %v1122
        %v1131 = vtanh.bf16.pop %v1094
        %v1132 = vunpack.c.l.bf16 %v1131
        %v1133 = vunpack.c.h.bf16 %v1131
        %v1134 = vmul.f32 %v1123, %v1132
        %v1135 = vmul.f32 %v1124, %v1133
        %v1136 = vmul.f32 %v1125, %v277
        %v1137 = vmul.f32 %v1126, %v278
        %v1138 = vadd.f32 %v1134, %v1136
        %v1139 = vadd.f32 %v1135, %v1137
        %v1140 = vmul.f32 %v1127, %v279
        %v1141 = vmul.f32 %v1128, %v280
        %v1142 = vadd.f32 %v1138, %v1140
        %v1143 = vadd.f32 %v1139, %v1141
        %v1144 = vpack.c.bf16 %v1143, %v1142
        %v1145 = vtanh.bf16.pop %v1144
        %v1146 = vunpack.c.l.bf16 %v1145
        %v1147 = vunpack.c.h.bf16 %v1145
        %v1148 = vmul.f32 %v1129, %v1146
        %v1149 = vmul.f32 %v1130, %v1147
        %1150 = vst [vmem:[%s271] sm:$0xff] %v1148
        %1151 = vst [vmem:[%s271 + $0x10] sm:$0xff] %v1149
        %1152 = vst [vmem:[%s271 + $0x8] sm:$0xff] %v1142
        %1153 = vst [vmem:[%s271 + $0x18] sm:$0xff] %v1143
        %s1154 = sand.u32 %s126, 1
        %s1155 = scalar_lea.sflag [#allocation4], %s1154
        %s1156 = sand.u32 %s126, 1
        %s1157 = smul.addr %s1156, 32
        %s1158 = scalar_lea.vmem [#allocation8], %s1157
        // Predicated region
        $region49: #{tpu_custom_call.1} parent=35 // pred_check
          %p1159 = pneg %p136
        $region50: #{tpu_custom_call.1} parent=35 // pred_check_branch
          %1161 = sbr.rel (%p1159) target = $region52
        $region51: #{tpu_custom_call.1} parent=35 // pred_region
          %s1162 = smul.u32 2, %s24
          %s1164 = ssub.s32 512, 512
          %1165 = vsyncadd %s1155, %s1164
          %s1166 = smul.addr %s1162, 2
          %s1167 = smul.addr %s1166, 128
          %s1168 = scalar_lea.hbm %s4, %s1167
          %s1169 = sshll.u32 %s1158, 4
          %s1170 = int_to_ptr.vmem [resolvable:$true] %s1169
          %1175 = dma.vmem_to_hbm [thread:$0]  %s1170, 512, %s1168, %s1155, 256, 256, 16
        $region52: #{tpu_custom_call.1} parent=35 // pred_fallthru
          _
      $region36: #{tpu_custom_call.1} parent=5 // pred_fallthru
        _
      %p1176 = scmp.le.s32.totalorder 2, %s19
      // Predicated region
      $region53: #{tpu_custom_call.1} parent=5 // pred_check
        %p1177 = pneg %p1176
      $region54: #{tpu_custom_call.1} parent=5 // pred_check_branch
        %1179 = sbr.rel (%p1177) target = $region56
      $region55: #{tpu_custom_call.1} parent=5 // pred_region
        %s1180 = ssub.s32 %s19, 2
        // Predicated region
        $region57: #{tpu_custom_call.1} parent=55 // pred_check
          %p1181 = pneg %p142
        $region58: #{tpu_custom_call.1} parent=55 // pred_check_branch
          %1183 = sbr.rel (%p1181) target = $region60
        $region59: #{tpu_custom_call.1} parent=55 // pred_region
          %s1184 = sand.u32 %s127, 1
          %s1185 = scalar_lea.sflag [#allocation4], %s1184
          %s1186 = sand.u32 %s127, 1
          %s1187 = smul.addr %s1186, 32
          %s1188 = scalar_lea.vmem [#allocation8], %s1187
          %1189 = dma.done %s1185, 512
        $region60: #{tpu_custom_call.1} parent=55 // pred_fallthru
          _
      $region56: #{tpu_custom_call.1} parent=5 // pred_fallthru
        _
    $region6: #{tpu_custom_call.1} parent=1 // loop_footer
      %s23 = sadd.s32 1, %s19
    $region7: #{tpu_custom_call.1} parent=1 // loop_footer_branch
      %18 = sbr.rel target = $region3
    $region8: #{tpu_custom_call.1} parent=1 // loop_exit
      _
    %1190 = vsyncpa [#allocation3], 1
    %s1191 = scalar_lea.sflag [#allocation3], 1
    %1192 = vsyncpa %s1191, 1
    %1193 = vsyncpa [#allocation6], 1
    %s1194 = scalar_lea.sflag [#allocation6], 1
    %1195 = vsyncpa %s1194, 1
    %1196 = vsyncpa [#allocation4], 1
    %s1197 = scalar_lea.sflag [#allocation4], 1
    %1198 = vsyncpa %s1197, 1

</llo_original>
